<compile_context>
chip_gen: v7x
topology: tpu7x:2x2x1
jax: 0.10.0
libtpu: 0.0.40
codegen_flags: <defaults>
</compile_context>

<pallas_src>
import functools

import jax
import jax.numpy as jnp
from jax.experimental import pallas as pl
from jax.experimental.pallas import tpu as pltpu


def _ls_ce_kernel(pred_ref, target_ref, out_ref, acc_ref, *,
                  label_smooth, class_num, n_total, block_rows):
    pid = pl.program_id(0)

    @pl.when(pid == 0)
    def _init():
        acc_ref[0, 0] = jnp.float32(0.0)

    pred = pred_ref[...].astype(jnp.float32)           # [TN, M], f32 in-register
    tgt = target_ref[...]                               # [TN, 1] int32
    tn, m = pred.shape

    # log-softmax pieces along the class (lane) axis; logprobs is never built.
    row_max = jnp.max(pred, axis=1, keepdims=True)                      # [TN,1]
    shifted = pred - row_max                                             # [TN,M]
    lse = jnp.log(jnp.sum(jnp.exp(shifted), axis=1, keepdims=True))      # [TN,1]
    sum_shifted = jnp.sum(shifted, axis=1, keepdims=True)                # [TN,1]

    # Pick the target column with one masked reduction (no one-hot tensor).
    class_ids = jax.lax.broadcasted_iota(jnp.int32, (1, m), 1)           # [1,M]
    shifted_tgt = jnp.sum(jnp.where(class_ids == tgt, shifted, 0.0),
                          axis=1, keepdims=True)                         # [TN,1]

    # Smoothed one-hot: low off-target, high on-target (matches torch.clamp
    # when low <= high, true for any sane label_smooth/class_num).
    low = jnp.float32(label_smooth / (class_num - 1))
    high = jnp.float32(1.0 - label_smooth)
    # -sum_j smoothed_j * logprobs_j
    #   = coef*lse - low*sum_shifted - (high-low)*shifted_tgt,
    # with coef = low*M + (high - low)  (== 1 exactly when class_num == M).
    coef = low * jnp.float32(m) + (high - low)
    per_row = coef * lse - low * sum_shifted - (high - low) * shifted_tgt  # [TN,1]

    # Mask padded rows of a partial last block (stale VMEM rows contribute 0).
    row_ids = jax.lax.broadcasted_iota(jnp.int32, (tn, 1), 0) + pid * block_rows
    per_row = jnp.where(row_ids < n_total, per_row, 0.0)

    acc_ref[0, 0] += jnp.sum(per_row)

    @pl.when(pid == pl.num_programs(0) - 1)
    def _finalize():
        out_ref[0, 0] = acc_ref[0, 0] / jnp.float32(n_total)


def label_smoothing_cross_entropy(pred, target, label_smooth=0.1, class_num=None,
                                  *, block_rows=256):
    """pred: [N, M] float (any float dtype), target: [N] int. Scalar f32 loss."""
    n, m = pred.shape
    if class_num is None:
        class_num = m
    assert class_num == m, "class_num must equal pred.shape[1]"

    if n <= block_rows:
        tn = n                                 # full-extent block is always legal
    else:
        assert block_rows % 8 == 0, "block_rows must be a multiple of 8"
        tn = block_rows
    grid = (pl.cdiv(n, tn),)

    tgt2d = target.astype(jnp.int32).reshape(n, 1)

    kern = functools.partial(
        _ls_ce_kernel,
        label_smooth=float(label_smooth),
        class_num=int(class_num),
        n_total=int(n),
        block_rows=int(tn),
    )
    # TODO(synk): for vocab-scale M (>= 32k) also tile the class axis with an
    # online-logsumexp carry (flash-style) so per-tile VMEM fits v7x's 64 MiB.
    out = pl.pallas_call(
        kern,
        out_shape=jax.ShapeDtypeStruct((1, 1), jnp.float32),
        grid=grid,
        in_specs=[
            pl.BlockSpec((tn, m), lambda i: (i, 0)),   # pred, native dtype
            pl.BlockSpec((tn, 1), lambda i: (i, 0)),   # target column
        ],
        out_specs=pl.BlockSpec((1, 1), lambda i: (0, 0),
                               memory_space=pltpu.MemorySpace.SMEM),
        scratch_shapes=[pltpu.SMEM((1, 1), jnp.float32)],
        compiler_params=pltpu.CompilerParams(
            dimension_semantics=("arbitrary",),        # scalar accumulator carry
            vmem_limit_bytes=64 * 1024 * 1024,
        ),
    )(pred, tgt2d)
    return out[0, 0]


def _reference(pred, target, label_smooth=0.1, class_num=None):
    pred = pred.astype(jnp.float32)
    n, m = pred.shape
    if class_num is None:
        class_num = m
    logprobs = jax.nn.log_softmax(pred, axis=1)
    onehot = jax.nn.one_hot(target, class_num, dtype=jnp.float32)
    smoothed = jnp.clip(onehot, label_smooth / (class_num - 1), 1.0 - label_smooth)
    loss = -jnp.sum(smoothed * logprobs, axis=1)
    return jnp.mean(loss)


if __name__ == "__main__":
    key = jax.random.PRNGKey(0)
    k_pred1, k_tgt1, k_pred2, k_tgt2 = jax.random.split(key, 4)

    # Case 1: single block (N <= block_rows).
    N1, C1 = 16, 128
    pred1 = jax.random.normal(k_pred1, (N1, C1), dtype=jnp.float32)
    tgt1 = jax.random.randint(k_tgt1, (N1,), 0, C1, dtype=jnp.int32)
    loss1 = jax.block_until_ready(
        label_smoothing_cross_entropy(pred1, tgt1, label_smooth=0.1, class_num=C1))
    ref1 = _reference(pred1, tgt1, 0.1, C1)
    assert jnp.allclose(loss1, ref1, rtol=1e-5, atol=1e-5), (loss1, ref1)

    # Case 2: multi-step grid with a partial (masked) last block.
    N2, C2 = 13, 32
    pred2 = jax.random.normal(k_pred2, (N2, C2), dtype=jnp.float32)
    tgt2 = jax.random.randint(k_tgt2, (N2,), 0, C2, dtype=jnp.int32)
    loss2 = jax.block_until_ready(
        label_smoothing_cross_entropy(pred2, tgt2, label_smooth=0.1, class_num=C2,
                                      block_rows=8))
    ref2 = _reference(pred2, tgt2, 0.1, C2)
    assert jnp.allclose(loss2, ref2, rtol=1e-5, atol=1e-5), (loss2, ref2)

    print("KERNEL_OK")
</pallas_src>

<mosaic_0001>
module attributes {stable_mosaic.version = 11 : i64} {
  func.func @_ls_ce_kernel(%arg0: i32, %arg1: memref<16x128xf32, #tpu.memory_space<vmem>>, %arg2: memref<16x1xi32, #tpu.memory_space<vmem>>, %arg3: memref<1x1xf32, #tpu.memory_space<smem>>, %arg4: memref<1x1xf32, #tpu.memory_space<smem>>) attributes {dimension_semantics = [#tpu.dimension_semantics<arbitrary>], iteration_bounds = array<i64: 1>, scalar_prefetch = 0 : i64, scratch_operands = 1 : i64, tpu.core_type = #tpu.core_type<tc>, window_params = [{transform_indices = @transform_0, window_bounds = array<i64: 16, 128>}, {transform_indices = @transform_1, window_bounds = array<i64: 16, 1>}, {transform_indices = @transform_2, window_bounds = array<i64: 1, 1>}]} {
    %c0_i32 = arith.constant 0 : i32
    %0 = arith.cmpi eq, %arg0, %c0_i32 : i32
    %1 = arith.extui %0 : i1 to i32
    %c0_i32_0 = arith.constant 0 : i32
    %2 = arith.cmpi ne, %1, %c0_i32_0 : i32
    scf.if %2 {
      %cst_24 = arith.constant 0.000000e+00 : f32
      %c0_25 = arith.constant 0 : index
      %c0_26 = arith.constant 0 : index
      %53 = memref.load %arg4[%c0_25, %c0_26] : memref<1x1xf32, #tpu.memory_space<smem>>
      memref.store %cst_24, %arg4[%c0_25, %c0_26] : memref<1x1xf32, #tpu.memory_space<smem>>
    } else {
    }
    %c0 = arith.constant 0 : index
    %c0_1 = arith.constant 0 : index
    %3 = vector.load %arg1[%c0, %c0_1] : memref<16x128xf32, #tpu.memory_space<vmem>>, vector<16x128xf32>
    %c0_2 = arith.constant 0 : index
    %c0_3 = arith.constant 0 : index
    %4 = vector.load %arg2[%c0_2, %c0_3] : memref<16x1xi32, #tpu.memory_space<vmem>>, vector<16x1xi32>
    %cst = arith.constant dense<0xFF800000> : vector<16xf32>
    %5 = vector.multi_reduction <maximumf>, %3, %cst [1] : vector<16x128xf32> to vector<16xf32>
    %6 = vector.shape_cast %5 : vector<16xf32> to vector<16x1xf32>
    %7 = vector.broadcast %6 : vector<16x1xf32> to vector<16x128xf32>
    %8 = arith.subf %3, %7 : vector<16x128xf32>
    %9 = math.exp %8 : vector<16x128xf32>
    %cst_4 = arith.constant dense<0.000000e+00> : vector<16xf32>
    %10 = vector.multi_reduction <add>, %9, %cst_4 [1] : vector<16x128xf32> to vector<16xf32>
    %11 = vector.shape_cast %10 : vector<16xf32> to vector<16x1xf32>
    %12 = math.log %11 : vector<16x1xf32>
    %cst_5 = arith.constant dense<0.000000e+00> : vector<16xf32>
    %13 = vector.multi_reduction <add>, %8, %cst_5 [1] : vector<16x128xf32> to vector<16xf32>
    %14 = vector.shape_cast %13 : vector<16xf32> to vector<16x1xf32>
    %15 = tpu.iota {dimensions = array<i32: 1>} : vector<1x128xi32>
    %16 = vector.broadcast %15 : vector<1x128xi32> to vector<16x128xi32>
    %17 = vector.broadcast %4 : vector<16x1xi32> to vector<16x128xi32>
    %18 = arith.cmpi eq, %16, %17 : vector<16x128xi32>
    %cst_6 = arith.constant 0.000000e+00 : f32
    %19 = vector.broadcast %cst_6 : f32 to vector<16x128xf32>
    %20 = arith.select %18, %8, %19 : vector<16x128xi1>, vector<16x128xf32>
    %cst_7 = arith.constant dense<0.000000e+00> : vector<16xf32>
    %21 = vector.multi_reduction <add>, %20, %cst_7 [1] : vector<16x128xf32> to vector<16xf32>
    %22 = vector.shape_cast %21 : vector<16xf32> to vector<16x1xf32>
    %cst_8 = arith.constant 7.87401571E-4 : f32
    %cst_9 = arith.constant 1.280000e+02 : f32
    %23 = arith.mulf %cst_8, %cst_9 : f32
    %cst_10 = arith.constant 0.899999976 : f32
    %cst_11 = arith.constant 7.87401571E-4 : f32
    %24 = arith.subf %cst_10, %cst_11 : f32
    %25 = arith.addf %23, %24 : f32
    %26 = vector.broadcast %25 : f32 to vector<16x1xf32>
    %27 = arith.mulf %26, %12 : vector<16x1xf32>
    %cst_12 = arith.constant 7.87401571E-4 : f32
    %28 = vector.broadcast %cst_12 : f32 to vector<16x1xf32>
    %29 = arith.mulf %28, %14 : vector<16x1xf32>
    %30 = arith.subf %27, %29 : vector<16x1xf32>
    %cst_13 = arith.constant 0.899999976 : f32
    %cst_14 = arith.constant 7.87401571E-4 : f32
    %31 = arith.subf %cst_13, %cst_14 : f32
    %32 = vector.broadcast %31 : f32 to vector<16x1xf32>
    %33 = arith.mulf %32, %22 : vector<16x1xf32>
    %34 = arith.subf %30, %33 : vector<16x1xf32>
    %35 = tpu.iota {dimensions = array<i32: 0>} : vector<16x1xi32>
    %c16_i32 = arith.constant 16 : i32
    %36 = arith.muli %arg0, %c16_i32 : i32
    %37 = vector.broadcast %36 : i32 to vector<16x1xi32>
    %38 = arith.addi %35, %37 : vector<16x1xi32>
    %c16_i32_15 = arith.constant 16 : i32
    %39 = vector.broadcast %c16_i32_15 : i32 to vector<16x1xi32>
    %40 = arith.cmpi slt, %38, %39 : vector<16x1xi32>
    %cst_16 = arith.constant 0.000000e+00 : f32
    %41 = vector.broadcast %cst_16 : f32 to vector<16x1xf32>
    %42 = arith.select %40, %34, %41 : vector<16x1xi1>, vector<16x1xf32>
    %c0_17 = arith.constant 0 : index
    %c0_18 = arith.constant 0 : index
    %43 = memref.load %arg4[%c0_17, %c0_18] : memref<1x1xf32, #tpu.memory_space<smem>>
    %44 = vector.shape_cast %42 : vector<16x1xf32> to vector<1x16x1xf32>
    %cst_19 = arith.constant dense<0.000000e+00> : vector<1xf32>
    %45 = vector.multi_reduction <add>, %44, %cst_19 [1, 2] : vector<1x16x1xf32> to vector<1xf32>
    %46 = vector.shape_cast %45 : vector<1xf32> to vector<1x1x1xf32>
    %47 = vector.extract %46[0, 0, 0] : f32 from vector<1x1x1xf32>
    %48 = arith.addf %43, %47 : f32
    %c0_20 = arith.constant 0 : index
    %c0_21 = arith.constant 0 : index
    %49 = memref.load %arg4[%c0_20, %c0_21] : memref<1x1xf32, #tpu.memory_space<smem>>
    memref.store %48, %arg4[%c0_20, %c0_21] : memref<1x1xf32, #tpu.memory_space<smem>>
    %c0_i32_22 = arith.constant 0 : i32
    %50 = arith.cmpi eq, %arg0, %c0_i32_22 : i32
    %51 = arith.extui %50 : i1 to i32
    %c0_i32_23 = arith.constant 0 : i32
    %52 = arith.cmpi ne, %51, %c0_i32_23 : i32
    scf.if %52 {
      %c0_24 = arith.constant 0 : index
      %c0_25 = arith.constant 0 : index
      %53 = memref.load %arg4[%c0_24, %c0_25] : memref<1x1xf32, #tpu.memory_space<smem>>
      %cst_26 = arith.constant 1.600000e+01 : f32
      %54 = arith.divf %53, %cst_26 : f32
      %c0_27 = arith.constant 0 : index
      %c0_28 = arith.constant 0 : index
      %55 = memref.load %arg3[%c0_27, %c0_28] : memref<1x1xf32, #tpu.memory_space<smem>>
      memref.store %54, %arg3[%c0_27, %c0_28] : memref<1x1xf32, #tpu.memory_space<smem>>
    } else {
    }
    return
  }
  func.func @transform_0(%arg0: i32) -> (i32, i32) {
    %c0_i32 = arith.constant 0 : i32
    %c0_i32_0 = arith.constant 0 : i32
    return %arg0, %c0_i32 : i32, i32
  }
  func.func @transform_1(%arg0: i32) -> (i32, i32) {
    %c0_i32 = arith.constant 0 : i32
    %c0_i32_0 = arith.constant 0 : i32
    return %arg0, %c0_i32 : i32, i32
  }
  func.func @transform_2(%arg0: i32) -> (i32, i32) {
    %c0_i32 = arith.constant 0 : i32
    %c0_i32_0 = arith.constant 0 : i32
    %c0_i32_1 = arith.constant 0 : i32
    return %c0_i32, %c0_i32_0 : i32, i32
  }
}

</mosaic_0001>

<llo_original>
// kernel: tpu_custom_call.1
$region0: #{tpu_custom_call.1}
  #allocation0 [shape = 'u32[]', space=smem, size = 0x4, offset = 0x4, fixed_abs, tag = 'smem constant byte address 0x4 - core index']
  #allocation1 [shape = 'u32[144,128]{1,0:T(1,128)}', space=vmem, size = 0x12000, scoped, tag = 'internal scratch']
  #allocation2 [shape = 'f32[1,1]{1,0:T(1,128)}', space=smem, size = 0x200, scoped, tag = 'scratch operand']
  %s0 = inlined_call_operand.hbm [shape: f32[16,128], index: 0, kind: input, shape index: {}]
  %s1 = inlined_call_operand.hbm [shape: s32[16,1], index: 1, kind: input, shape index: {}]
  %s2 = inlined_call_operand.hbm [shape: f32[1,1], index: 2, kind: output, shape index: {}]
  %s3 = sld [smem:[#allocation0]]
  $region34: #{tpu_custom_call.1} parent=0
    _
  %s5 = ssub.s32 1, %s3
  %s6 = scalar_select 0, %s5, %s3
  $region1: #{tpu_custom_call.1} parent=0
    #allocation3 [shape = 'u8[8192]{0}', space=vmem, size = 0x2000, scoped, tag = 'input window, operand 0, single buffered']
    #allocation4 [shape = 's32[1]{0}', space=sflag, size = 0x4, scoped, tag = 'scoped memory for tpu_custom_call.1']
    #allocation5 [shape = 's32[1]{0}', space=sflag, size = 0x4, scoped, tag = 'scoped memory for tpu_custom_call.1']
    #allocation6 [shape = 'u8[8192]{0}', space=vmem, size = 0x2000, scoped, tag = 'input window, operand 1, single buffered']
    #allocation7 [shape = 's32[1]{0}', space=sflag, size = 0x4, scoped, tag = 'scoped memory for tpu_custom_call.1']
    #allocation8 [shape = 'u8[512]{0}', space=smem, size = 0x200, scoped, tag = 'output window, operand 0, single buffered']
    %7 = vsyncpa [#allocation4], 0
    %8 = vsyncpa [#allocation7], 0
    %9 = vsyncpa [#allocation5], 0
    // Predicated region
    $region2: #{tpu_custom_call.1} parent=1 // pred_check
      _
    $region3: #{tpu_custom_call.1} parent=1 // pred_check_branch
      %11 = sbr.rel (0) target = $region5
    $region4: #{tpu_custom_call.1} parent=1 // pred_region
      %s13 = ssub.s32 256, 256
      %14 = vsyncadd [#allocation4], %s13
      %s15 = sshll.u32 [#allocation3], 4
      %s16 = int_to_ptr.vmem [resolvable:$true] %s15
      %21 = dma.hbm_to_vmem [thread:$0]  %s0, 256, %s16, [#allocation4], 128, 128, 8
    $region5: #{tpu_custom_call.1} parent=1 // pred_fallthru
      _
    // Predicated region
    $region6: #{tpu_custom_call.1} parent=1 // pred_check
      _
    $region7: #{tpu_custom_call.1} parent=1 // pred_check_branch
      %23 = sbr.rel (0) target = $region9
    $region8: #{tpu_custom_call.1} parent=1 // pred_region
      %s25 = ssub.s32 256, 256
      %26 = vsyncadd [#allocation7], %s25
      %s27 = sshll.u32 [#allocation6], 4
      %s28 = int_to_ptr.vmem [resolvable:$true] %s27
      %33 = dma.hbm_to_vmem [thread:$0]  %s1, 256, %s28, [#allocation7], 128, 128, 8
    $region9: #{tpu_custom_call.1} parent=1 // pred_fallthru
      _
    // Predicated region
    $region10: #{tpu_custom_call.1} parent=1 // pred_check
      _
    $region11: #{tpu_custom_call.1} parent=1 // pred_check_branch
      %35 = sbr.rel (0) target = $region13
    $region12: #{tpu_custom_call.1} parent=1 // pred_region
      %36 = dma.done [#allocation4], 256
    $region13: #{tpu_custom_call.1} parent=1 // pred_fallthru
      _
    // Predicated region
    $region14: #{tpu_custom_call.1} parent=1 // pred_check
      _
    $region15: #{tpu_custom_call.1} parent=1 // pred_check_branch
      %38 = sbr.rel (0) target = $region17
    $region16: #{tpu_custom_call.1} parent=1 // pred_region
      %39 = dma.done [#allocation7], 256
    $region17: #{tpu_custom_call.1} parent=1 // pred_fallthru
      _
    %p40 = scmp.eq.s32.totalorder 0, 0
    // Predicated region
    $region18: #{tpu_custom_call.1} parent=1 // pred_check
      %p41 = pneg %p40
    $region19: #{tpu_custom_call.1} parent=1 // pred_check_branch
      %43 = sbr.rel (%p41) target = $region21
    $region20: #{tpu_custom_call.1} parent=1 // pred_region
      %s44 = scalar_lea.smem [#allocation2], 0
      %45 = sst [smem:[%s44]] 0.0
    $region21: #{tpu_custom_call.1} parent=1 // pred_fallthru
      _
    %v46 = vld [vmem:[#allocation3] sm:$0xff]
    %v47 = vld [vmem:[#allocation3 + $0x8] sm:$0xff]
    %v48 = vld [vmem:[#allocation6] sm:$0xff]
    %v49 = vld [vmem:[#allocation6 + $0x8] sm:$0xff]
    %50 = vmax.xlane.f32.xlu0 %v46
    %v51 = vpop.xlane.xlu0 %50
    %52 = vmax.xlane.f32.xlu0 %v47
    %v53 = vpop.xlane.xlu0 %52
    %v54 = vsub.f32 %v46, %v51
    %v55 = vsub.f32 %v47, %v53
    %v56 = vmul.f32 %v54, 1.442695
    %v57 = vpow.pop %v56
    %v58 = vmul.f32 %v55, 1.442695
    %v59 = vpow.pop %v58
    %60 = vadd.xlane.f32.xlu0 %v57
    %v61 = vpop.xlane.xlu0 %60
    %62 = vadd.xlane.f32.xlu0 %v59
    %v63 = vpop.xlane.xlu0 %62
    %v64 = vlog2.pop %v61
    %v65 = vmul.f32 %v64, 0.6931472
    %v66 = vlog2.pop %v63
    %v67 = vmul.f32 %v66, 0.6931472
    %68 = vadd.xlane.f32.xlu0 %v54
    %v69 = vpop.xlane.xlu0 %68
    %70 = vadd.xlane.f32.xlu0 %v55
    %v71 = vpop.xlane.xlu0 %70
    %v72 = vlaneseq
    %v73 = vand.u32 %v72, 127
    %74 = vset.pattern.permute.xlu0 0
    %75 = vperm.xlu0 %74, %v48
    %v76 = vpop.permute.xlu0 %75
    %77 = vset.pattern.permute.xlu0 0
    %78 = vperm.xlu0 %77, %v49
    %v79 = vpop.permute.xlu0 %78
    %vm80 = vcmp.eq.s32.totalorder %v73, %v76
    %vm81 = vcmp.eq.s32.totalorder %v73, %v79
    %v82 = vsel %vm80, %v54, 0.0
    %v83 = vsel %vm81, %v55, 0.0
    %84 = vadd.xlane.f32.xlu0 %v82
    %v85 = vpop.xlane.xlu0 %84
    %86 = vadd.xlane.f32.xlu0 %v83
    %v87 = vpop.xlane.xlu0 %86
    %v88 = vmul.f32 %v69, 0.0007874016
    %v89 = vmul.f32 %v71, 0.0007874016
    %v90 = vsub.f32 %v65, %v88
    %v91 = vsub.f32 %v67, %v89
    %v92 = vmul.f32 %v85, 0.8992126
    %v93 = vmul.f32 %v87, 0.8992126
    %v94 = vsub.f32 %v90, %v92
    %v95 = vsub.f32 %v91, %v93
    %v96 = vlaneseq
    %v97 = vshrl.u32 %v96, 7
    %v98 = vadd.s32 %v97, 8
    %s99 = smul.u32 0, 16
    %v100 = vstv %s99
    %v101 = vadd.s32 %v97, %v100
    %v102 = vadd.s32 %v98, %v100
    %vm103 = vcmp.lt.s32.totalorder %v101, 16
    %vm104 = vcmp.lt.s32.totalorder %v102, 16
    %v105 = vsel %vm103, %v94, 0.0
    %v106 = vsel %vm104, %v95, 0.0
    %s107 = sld [smem:[#allocation2]]
    %vm108 = vcmask 7168
    %v109 = vsel %vm108, %v105, 0.0
    %v110 = vsel %vm108, %v106, 0.0
    %v111 = vadd.f32 %v109, %v110
    %112 = vadd.xlane.f32.xlu0 %v111
    %v113 = vpop.xlane.xlu0 %112
    %v114 = vrot.slane %v113, 4
    %v115 = vadd.f32 %v113, %v114
    %v116 = vrot.slane %v115, 2
    %v117 = vadd.f32 %v115, %v116
    %v118 = vrot.slane %v117, 1
    %v119 = vadd.f32 %v117, %v118
    %s120 = vtos %v119
    %s121 = sadd.f32 %s107, %s120
    %s122 = scalar_lea.smem [#allocation2], 0
    %123 = sst [smem:[%s122]] %s121
    // Predicated region
    $region22: #{tpu_custom_call.1} parent=1 // pred_check
      %p124 = pneg %p40
    $region23: #{tpu_custom_call.1} parent=1 // pred_check_branch
      %126 = sbr.rel (%p124) target = $region25
    $region24: #{tpu_custom_call.1} parent=1 // pred_region
      %s127 = sld [smem:[#allocation2]]
      %v128 = vrcp.pop 16.0
      %s129 = vtos %v128
      %s130 = smul.f32 %s127, %s129
      %s131 = scalar_lea.smem [#allocation8], 0
      %132 = sst [smem:[%s131]] %s130
    $region25: #{tpu_custom_call.1} parent=1 // pred_fallthru
      _
    // Predicated region
    $region26: #{tpu_custom_call.1} parent=1 // pred_check
      _
    $region27: #{tpu_custom_call.1} parent=1 // pred_check_branch
      %134 = sbr.rel (0) target = $region29
    $region28: #{tpu_custom_call.1} parent=1 // pred_region
      %s136 = ssub.s32 16, 16
      %137 = vsyncadd [#allocation5], %s136
      %140 = dma.smem_to_hbm [#allocation8], 16, %s2, [#allocation5]
    $region29: #{tpu_custom_call.1} parent=1 // pred_fallthru
      _
    // Predicated region
    $region30: #{tpu_custom_call.1} parent=1 // pred_check
      _
    $region31: #{tpu_custom_call.1} parent=1 // pred_check_branch
      %142 = sbr.rel (0) target = $region33
    $region32: #{tpu_custom_call.1} parent=1 // pred_region
      %143 = dma.done [#allocation5], 16
    $region33: #{tpu_custom_call.1} parent=1 // pred_fallthru
      _
    %144 = sfence
    %145 = vsyncpa [#allocation4], 1
    %146 = vsyncpa [#allocation7], 1
    %147 = vsyncpa [#allocation5], 1

</llo_original>
